<compile_context>
chip_gen: v6e
topology: v6e:2x2x1
jax: 0.10.0
libtpu: 0.0.40
codegen_flags: <defaults>
</compile_context>

<pallas_src>
import functools

import jax
import jax.numpy as jnp
from jax.experimental import pallas as pl
from jax.experimental.pallas import tpu as pltpu


def _round_up(a, b):
    return (a + b - 1) // b * b


def _vmem_capacity_bytes():
    try:
        return int(pltpu.get_tpu_info().vmem_capacity_bytes)
    except Exception:
        return 64 << 20  # conservative (v7x-class) fallback


# ---------------------------------------------------------------------------
# Kernels
# ---------------------------------------------------------------------------
def _mlp_kernel_acc(x_ref, wg_ref, wu_ref, wd_ref, o_ref, acc_ref):
    """One (M-tile, I-block) step with a separate f32 accumulator scratch.

    Used when the output dtype is not f32 (e.g. bf16 activations).
    """
    k = pl.program_id(1)
    x = x_ref[...]
    gate = jnp.dot(x, wg_ref[...], preferred_element_type=jnp.float32)
    up = jnp.dot(x, wu_ref[...], preferred_element_type=jnp.float32)
    # SiLU(gate) * up in f32 (sigmoid on EUP, mul on VPU).
    hidden = (gate * jax.nn.sigmoid(gate)) * up
    part = jnp.dot(hidden.astype(wd_ref.dtype), wd_ref[...],
                   preferred_element_type=jnp.float32)

    @pl.when(k == 0)
    def _():  # direct write: saves one full (tm, O) f32 read+write per M tile
        acc_ref[...] = part

    @pl.when(k > 0)
    def _():
        acc_ref[...] += part

    @pl.when(k == pl.num_programs(1) - 1)
    def _():
        o_ref[...] = acc_ref[...].astype(o_ref.dtype)


def _mlp_kernel_f32out(x_ref, wg_ref, wu_ref, wd_ref, o_ref):
    """Same step, accumulating directly into the f32 output tile.

    The output block index is k-invariant, so the tile stays resident in VMEM
    across the reduction axis; no separate accumulator scratch is needed.
    """
    k = pl.program_id(1)
    x = x_ref[...]
    gate = jnp.dot(x, wg_ref[...], preferred_element_type=jnp.float32)
    up = jnp.dot(x, wu_ref[...], preferred_element_type=jnp.float32)
    hidden = (gate * jax.nn.sigmoid(gate)) * up
    part = jnp.dot(hidden.astype(wd_ref.dtype), wd_ref[...],
                   preferred_element_type=jnp.float32)

    @pl.when(k == 0)
    def _():
        o_ref[...] = part

    @pl.when(k > 0)
    def _():
        o_ref[...] += part


# ---------------------------------------------------------------------------
# Wrapper
# ---------------------------------------------------------------------------
def llama_mlp(x, w_gate_t, w_up_t, w_down_t, *, tm=None, ti=None,
              compute_dtype=jnp.bfloat16, weight_buffers=2):
    """SwiGLU MLP forward: down(silu(x@Wg) * (x@Wu)).

    x:        [B, S, H]
    w_gate_t: [H, I]  (transposed nn.Linear weight, i.e. (in, out))
    w_up_t:   [H, I]
    w_down_t: [I, O]
    """
    B, S, H = x.shape
    I = w_gate_t.shape[1]
    O = w_down_t.shape[1]
    out_dtype = x.dtype
    M = B * S

    cbytes = jnp.dtype(compute_dtype).itemsize
    obytes = jnp.dtype(out_dtype).itemsize

    H_pad = _round_up(H, 128)     # lane-dense x loads / weight rows
    O_pad = _round_up(O, 128)     # lane-dense output stores

    vmem_cap = _vmem_capacity_bytes()
    vmem_budget = int(vmem_cap * 0.85)   # headroom for compiler-internal scratch

    # --- tile sizing (chip / VMEM aware) ------------------------------------
    # Weight blocks are re-streamed once per M tile, so arithmetic intensity on
    # weight HBM traffic is ~tm FLOP/byte.  Aim for tm >= 512 on 128 MiB parts
    # (v5e/v6e roofline knees ~240 / ~650 FLOP/byte) and 384 on 64 MiB parts
    # (v7x knee ~310 FLOP/byte).  ti stays a multiple of 128 (256 fills the
    # 256-wide MXU and keeps the gate/up split lane-tile aligned).
    if tm is None:
        tm = 512 if vmem_cap >= (96 << 20) else 384
    if ti is None:
        ti = 256
    tm = max(8, min(_round_up(tm, 8), _round_up(M, 8)))
    ti = max(128, min(_round_up(ti, 128), _round_up(I, 128)))

    use_acc = out_dtype != jnp.float32

    def est(tm_, ti_):
        # Double-buffered pipeline buffers + accumulator + in-kernel f32 temps.
        return (2 * tm_ * H_pad * cbytes                   # x tile
                + weight_buffers * H_pad * ti_ * cbytes    # gate weight block
                + weight_buffers * H_pad * ti_ * cbytes    # up weight block
                + weight_buffers * ti_ * O_pad * cbytes    # down weight block
                + 2 * tm_ * O_pad * obytes                 # output tile
                + (tm_ * O_pad * 4 if use_acc else 0)      # f32 accumulator
                + 3 * tm_ * ti_ * 4                        # f32 gate/up/hidden
                + tm_ * O_pad * 4)                         # f32 down partial

    while est(tm, ti) > vmem_budget and tm > 128:
        tm = max(128, _round_up(tm // 2, 8))
    while est(tm, ti) > vmem_budget and ti > 128:
        ti = max(128, _round_up(ti // 2, 128))

    M_pad = _round_up(M, tm)
    I_pad = _round_up(I, ti)
    nk = I_pad // ti

    # --- operand prep: cast / pad only when actually needed -----------------
    # (Real Llama dims are already multiples of 128 -> no padding pass; in a
    #  production model the cast/padded weights should be cached by the caller.)
    def prep(a, rows, cols):
        if a.dtype != compute_dtype:
            a = a.astype(compute_dtype)
        if a.shape != (rows, cols):
            a = jnp.pad(a, ((0, rows - a.shape[0]), (0, cols - a.shape[1])))
        return a

    x2 = prep(x.reshape(M, H), M_pad, H_pad)
    wg = prep(w_gate_t, H_pad, I_pad)
    wu = prep(w_up_t, H_pad, I_pad)
    wd = prep(w_down_t, I_pad, O_pad)

    vmem_limit = int(min(max(int(1.25 * est(tm, ti)), 32 << 20),
                         vmem_cap - (4 << 20)))

    kernel = _mlp_kernel_acc if use_acc else _mlp_kernel_f32out
    scratch = [pltpu.VMEM((tm, O_pad), jnp.float32)] if use_acc else []

    # Optional deeper weight pipelining (e.g. Buffered(3) on v6e if the weight
    # DMA is still exposed); default stays at the standard double buffer.
    if weight_buffers != 2:
        wspec = functools.partial(pl.BlockSpec,
                                  pipeline_mode=pl.Buffered(weight_buffers))
    else:
        wspec = pl.BlockSpec

    out = pl.pallas_call(
        kernel,
        out_shape=jax.ShapeDtypeStruct((M_pad, O_pad), out_dtype),
        grid_spec=pltpu.PrefetchScalarGridSpec(
            num_scalar_prefetch=0,
            grid=(M_pad // tm, nk),                        # reduction axis last
            in_specs=[
                pl.BlockSpec((tm, H_pad), lambda i, k: (i, 0)),   # x (k-resident)
                wspec((H_pad, ti), lambda i, k: (0, k)),          # gate block
                wspec((H_pad, ti), lambda i, k: (0, k)),          # up block
                wspec((ti, O_pad), lambda i, k: (k, 0)),          # down block
            ],
            out_specs=pl.BlockSpec((tm, O_pad), lambda i, k: (i, 0)),
            scratch_shapes=scratch,
        ),
        compiler_params=pltpu.CompilerParams(
            dimension_semantics=("parallel", "arbitrary"),
            vmem_limit_bytes=vmem_limit,
        ),
    )(x2, wg, wu, wd)

    return out[:M, :O].reshape(B, S, O)


def _reference(x, w_gate_t, w_up_t, w_down_t):
    gate = x @ w_gate_t
    up = x @ w_up_t
    return (jax.nn.silu(gate) * up) @ w_down_t


if __name__ == "__main__":
    # Small shapes consistent with the module: hidden=32, intermediate=64,
    # output defaults to hidden. Input [batch=2, seq=64, hidden=32].
    B, S, H, I = 2, 64, 32, 64
    O = H  # output_size=None -> hidden_size

    key = jax.random.PRNGKey(0)
    kx, kg, ku, kd = jax.random.split(key, 4)

    x = jax.random.normal(kx, (B, S, H), dtype=jnp.float32)

    # nn.Linear weight is (out, in); store transposed as (in, out).
    bound_g = 1.0 / (H ** 0.5)
    bound_d = 1.0 / (I ** 0.5)
    w_gate_t = jax.random.uniform(kg, (H, I), jnp.float32, -bound_g, bound_g)
    w_up_t = jax.random.uniform(ku, (H, I), jnp.float32, -bound_g, bound_g)
    w_down_t = jax.random.uniform(kd, (I, O), jnp.float32, -bound_d, bound_d)

    ref = _reference(x, w_gate_t, w_up_t, w_down_t)

    # 1) f32 compute, f32 output (direct o_ref accumulation path): tight check.
    out_f32 = llama_mlp(x, w_gate_t, w_up_t, w_down_t,
                        compute_dtype=jnp.float32)
    out_f32 = jax.block_until_ready(out_f32)
    assert out_f32.shape == (B, S, O)
    assert jnp.allclose(out_f32, ref, atol=1e-4, rtol=1e-4), \
        "f32 kernel mismatch vs reference"

    # 2) bf16 weight/activation streaming, f32 output (the perf config).
    out_bf16 = llama_mlp(x, w_gate_t, w_up_t, w_down_t,
                         compute_dtype=jnp.bfloat16)
    out_bf16 = jax.block_until_ready(out_bf16)
    assert out_bf16.shape == (B, S, O)
    assert jnp.allclose(out_bf16, ref, atol=1e-1, rtol=5e-2), \
        "bf16 kernel mismatch vs reference"

    # 3) bf16 input -> bf16 output (exercises the f32 accumulator-scratch path).
    out_bf_io = llama_mlp(x.astype(jnp.bfloat16), w_gate_t, w_up_t, w_down_t,
                          compute_dtype=jnp.bfloat16)
    out_bf_io = jax.block_until_ready(out_bf_io)
    assert out_bf_io.shape == (B, S, O)
    assert jnp.allclose(out_bf_io.astype(jnp.float32), ref,
                        atol=1.5e-1, rtol=1e-1), \
        "bf16-io kernel mismatch vs reference"

    print("KERNEL_OK")
</pallas_src>

<mosaic_0001>
module attributes {stable_mosaic.version = 11 : i64} {
  func.func @_mlp_kernel_f32out(%arg0: i32, %arg1: i32, %arg2: memref<128x128xf32, #tpu.memory_space<vmem>>, %arg3: memref<128x128xf32, #tpu.memory_space<vmem>>, %arg4: memref<128x128xf32, #tpu.memory_space<vmem>>, %arg5: memref<128x128xf32, #tpu.memory_space<vmem>>, %arg6: memref<128x128xf32, #tpu.memory_space<vmem>>) attributes {dimension_semantics = [#tpu.dimension_semantics<parallel>, #tpu.dimension_semantics<arbitrary>], iteration_bounds = array<i64: 1, 1>, scalar_prefetch = 0 : i64, scratch_operands = 0 : i64, tpu.core_type = #tpu.core_type<tc>, window_params = [{transform_indices = @transform_0, window_bounds = array<i64: 128, 128>}, {transform_indices = @transform_1, window_bounds = array<i64: 128, 128>}, {transform_indices = @transform_2, window_bounds = array<i64: 128, 128>}, {transform_indices = @transform_3, window_bounds = array<i64: 128, 128>}, {transform_indices = @transform_4, window_bounds = array<i64: 128, 128>}]} {
    %c0 = arith.constant 0 : index
    %c0_0 = arith.constant 0 : index
    %0 = vector.load %arg2[%c0, %c0_0] : memref<128x128xf32, #tpu.memory_space<vmem>>, vector<128x128xf32>
    %c0_1 = arith.constant 0 : index
    %c0_2 = arith.constant 0 : index
    %1 = vector.load %arg3[%c0_1, %c0_2] : memref<128x128xf32, #tpu.memory_space<vmem>>, vector<128x128xf32>
    %cst = arith.constant dense<0.000000e+00> : vector<128x128xf32>
    %2 = tpu.matmul %0, %1, %cst {dimension_numbers = #tpu.dot_dimension_numbers<[1], [0], [0], [1], [0, 0, 1, 1], [], []>} : vector<128x128xf32>, vector<128x128xf32>, vector<128x128xf32> -> vector<128x128xf32>
    %c0_3 = arith.constant 0 : index
    %c0_4 = arith.constant 0 : index
    %3 = vector.load %arg4[%c0_3, %c0_4] : memref<128x128xf32, #tpu.memory_space<vmem>>, vector<128x128xf32>
    %cst_5 = arith.constant dense<0.000000e+00> : vector<128x128xf32>
    %4 = tpu.matmul %0, %3, %cst_5 {dimension_numbers = #tpu.dot_dimension_numbers<[1], [0], [0], [1], [0, 0, 1, 1], [], []>} : vector<128x128xf32>, vector<128x128xf32>, vector<128x128xf32> -> vector<128x128xf32>
    %5 = arith.negf %2 : vector<128x128xf32>
    %6 = math.exp %5 : vector<128x128xf32>
    %cst_6 = arith.constant 1.000000e+00 : f32
    %7 = vector.broadcast %cst_6 : f32 to vector<128x128xf32>
    %8 = arith.addf %7, %6 : vector<128x128xf32>
    %9 = arith.divf %7, %8 : vector<128x128xf32>
    %10 = arith.mulf %2, %9 : vector<128x128xf32>
    %11 = arith.mulf %10, %4 : vector<128x128xf32>
    %c0_7 = arith.constant 0 : index
    %c0_8 = arith.constant 0 : index
    %12 = vector.load %arg5[%c0_7, %c0_8] : memref<128x128xf32, #tpu.memory_space<vmem>>, vector<128x128xf32>
    %cst_9 = arith.constant dense<0.000000e+00> : vector<128x128xf32>
    %13 = tpu.matmul %11, %12, %cst_9 {dimension_numbers = #tpu.dot_dimension_numbers<[1], [0], [0], [1], [0, 0, 1, 1], [], []>} : vector<128x128xf32>, vector<128x128xf32>, vector<128x128xf32> -> vector<128x128xf32>
    %c0_i32 = arith.constant 0 : i32
    %14 = arith.cmpi eq, %arg1, %c0_i32 : i32
    %15 = arith.extui %14 : i1 to i32
    %c0_i32_10 = arith.constant 0 : i32
    %16 = arith.cmpi ne, %15, %c0_i32_10 : i32
    scf.if %16 {
      %c0_13 = arith.constant 0 : index
      %c0_14 = arith.constant 0 : index
      %20 = vector.load %arg6[%c0_13, %c0_14] : memref<128x128xf32, #tpu.memory_space<vmem>>, vector<128x128xf32>
      tpu.vector_store %arg6[%c0_13, %c0_14], %13 {strides = array<i32>} : memref<128x128xf32, #tpu.memory_space<vmem>>, vector<128x128xf32>,
    } else {
    }
    %c0_i32_11 = arith.constant 0 : i32
    %17 = arith.cmpi sgt, %arg1, %c0_i32_11 : i32
    %18 = arith.extui %17 : i1 to i32
    %c0_i32_12 = arith.constant 0 : i32
    %19 = arith.cmpi ne, %18, %c0_i32_12 : i32
    scf.if %19 {
      %c0_13 = arith.constant 0 : index
      %c0_14 = arith.constant 0 : index
      %20 = vector.load %arg6[%c0_13, %c0_14] : memref<128x128xf32, #tpu.memory_space<vmem>>, vector<128x128xf32>
      %21 = arith.addf %20, %13 : vector<128x128xf32>
      %c0_15 = arith.constant 0 : index
      %c0_16 = arith.constant 0 : index
      %22 = vector.load %arg6[%c0_15, %c0_16] : memref<128x128xf32, #tpu.memory_space<vmem>>, vector<128x128xf32>
      tpu.vector_store %arg6[%c0_15, %c0_16], %21 {strides = array<i32>} : memref<128x128xf32, #tpu.memory_space<vmem>>, vector<128x128xf32>,
    } else {
    }
    return
  }
  func.func @transform_0(%arg0: i32, %arg1: i32) -> (i32, i32) {
    %c0_i32 = arith.constant 0 : i32
    %c0_i32_0 = arith.constant 0 : i32
    return %arg0, %c0_i32 : i32, i32
  }
  func.func @transform_1(%arg0: i32, %arg1: i32) -> (i32, i32) {
    %c0_i32 = arith.constant 0 : i32
    %c0_i32_0 = arith.constant 0 : i32
    return %c0_i32, %arg1 : i32, i32
  }
  func.func @transform_2(%arg0: i32, %arg1: i32) -> (i32, i32) {
    %c0_i32 = arith.constant 0 : i32
    %c0_i32_0 = arith.constant 0 : i32
    return %c0_i32, %arg1 : i32, i32
  }
  func.func @transform_3(%arg0: i32, %arg1: i32) -> (i32, i32) {
    %c0_i32 = arith.constant 0 : i32
    %c0_i32_0 = arith.constant 0 : i32
    return %arg1, %c0_i32 : i32, i32
  }
  func.func @transform_4(%arg0: i32, %arg1: i32) -> (i32, i32) {
    %c0_i32 = arith.constant 0 : i32
    %c0_i32_0 = arith.constant 0 : i32
    return %arg0, %c0_i32 : i32, i32
  }
}

</mosaic_0001>

<llo_original>
// kernel: tpu_custom_call.1
$region0: #{tpu_custom_call.1}
  #allocation0 [shape = 'u32[]', space=smem, size = 0x4, offset = 0x4, fixed_abs, tag = 'smem constant byte address 0x4 - core index']
  #allocation1 [shape = 'u32[144,128]{1,0:T(1,128)}', space=vmem, size = 0x12000, scoped, tag = 'internal scratch']
  %s0 = inlined_call_operand.hbm [shape: f32[128,128], index: 0, kind: input, shape index: {}]
  %s1 = inlined_call_operand.hbm [shape: f32[128,128], index: 1, kind: input, shape index: {}]
  %s2 = inlined_call_operand.hbm [shape: f32[128,128], index: 2, kind: input, shape index: {}]
  %s3 = inlined_call_operand.hbm [shape: f32[128,128], index: 3, kind: input, shape index: {}]
  %s4 = inlined_call_operand.hbm [shape: f32[128,128], index: 4, kind: output, shape index: {}]
  %s5 = sld [smem:[#allocation0]]
  $region50: #{tpu_custom_call.1} parent=0
    _
  %s7 = ssub.s32 1, %s5
  %s8 = scalar_select 0, %s7, %s5
  $region1: #{tpu_custom_call.1} parent=0
    #allocation2 [shape = 'u8[65536]{0}', space=vmem, size = 0x10000, scoped, tag = 'input window, operand 0, single buffered']
    #allocation3 [shape = 's32[1]{0}', space=sflag, size = 0x4, scoped, tag = 'scoped memory for tpu_custom_call.1']
    #allocation4 [shape = 's32[1]{0}', space=sflag, size = 0x4, scoped, tag = 'scoped memory for tpu_custom_call.1']
    #allocation5 [shape = 'u8[65536]{0}', space=vmem, size = 0x10000, scoped, tag = 'input window, operand 1, single buffered']
    #allocation6 [shape = 's32[1]{0}', space=sflag, size = 0x4, scoped, tag = 'scoped memory for tpu_custom_call.1']
    #allocation7 [shape = 'u8[65536]{0}', space=vmem, size = 0x10000, scoped, tag = 'input window, operand 2, single buffered']
    #allocation8 [shape = 'u8[65536]{0}', space=vmem, size = 0x10000, scoped, tag = 'input window, operand 3, single buffered']
    #allocation9 [shape = 's32[1]{0}', space=sflag, size = 0x4, scoped, tag = 'scoped memory for tpu_custom_call.1']
    #allocation10 [shape = 'u8[65536]{0}', space=vmem, size = 0x10000, scoped, tag = 'output window, operand 0, single buffered']
    %9 = vsyncpa [#allocation3], 0
    %10 = vsyncpa [#allocation6], 0
    %11 = vsyncpa [#allocation9], 0
    %12 = vsyncpa [#allocation4], 0
    // Predicated region
    $region2: #{tpu_custom_call.1} parent=1 // pred_check
      _
    $region3: #{tpu_custom_call.1} parent=1 // pred_check_branch
      %14 = sbr.rel (0) target = $region5
    $region4: #{tpu_custom_call.1} parent=1 // pred_region
      %s16 = ssub.s32 2048, 2048
      %17 = vsyncadd [#allocation3], %s16
      %s18 = sshll.u32 [#allocation2], 4
      %s19 = int_to_ptr.vmem [resolvable:$true] %s18
      %24 = dma.hbm_to_vmem [thread:$0]  %s0, 2048, %s19, [#allocation3], 128, 128, 8
    $region5: #{tpu_custom_call.1} parent=1 // pred_fallthru
      _
    // Predicated region
    $region6: #{tpu_custom_call.1} parent=1 // pred_check
      _
    $region7: #{tpu_custom_call.1} parent=1 // pred_check_branch
      %26 = sbr.rel (0) target = $region9
    $region8: #{tpu_custom_call.1} parent=1 // pred_region
      %s28 = ssub.s32 2048, 2048
      %29 = vsyncadd [#allocation6], %s28
      %s30 = sshll.u32 [#allocation5], 4
      %s31 = int_to_ptr.vmem [resolvable:$true] %s30
      %36 = dma.hbm_to_vmem [thread:$0]  %s1, 2048, %s31, [#allocation6], 128, 128, 8
    $region9: #{tpu_custom_call.1} parent=1 // pred_fallthru
      _
    // Predicated region
    $region10: #{tpu_custom_call.1} parent=1 // pred_check
      _
    $region11: #{tpu_custom_call.1} parent=1 // pred_check_branch
      %38 = sbr.rel (0) target = $region13
    $region12: #{tpu_custom_call.1} parent=1 // pred_region
      %s40 = ssub.s32 2048, 2048
      %41 = vsyncadd [#allocation6], %s40
      %s42 = sshll.u32 [#allocation7], 4
      %s43 = int_to_ptr.vmem [resolvable:$true] %s42
      %48 = dma.hbm_to_vmem [thread:$0]  %s2, 2048, %s43, [#allocation6], 128, 128, 8
    $region13: #{tpu_custom_call.1} parent=1 // pred_fallthru
      _
    // Predicated region
    $region14: #{tpu_custom_call.1} parent=1 // pred_check
      _
    $region15: #{tpu_custom_call.1} parent=1 // pred_check_branch
      %50 = sbr.rel (0) target = $region17
    $region16: #{tpu_custom_call.1} parent=1 // pred_region
      %s52 = ssub.s32 2048, 2048
      %53 = vsyncadd [#allocation9], %s52
      %s54 = sshll.u32 [#allocation8], 4
      %s55 = int_to_ptr.vmem [resolvable:$true] %s54
      %60 = dma.hbm_to_vmem [thread:$0]  %s3, 2048, %s55, [#allocation9], 128, 128, 8
    $region17: #{tpu_custom_call.1} parent=1 // pred_fallthru
      _
    // Predicated region
    $region18: #{tpu_custom_call.1} parent=1 // pred_check
      _
    $region19: #{tpu_custom_call.1} parent=1 // pred_check_branch
      %62 = sbr.rel (0) target = $region21
    $region20: #{tpu_custom_call.1} parent=1 // pred_region
      %63 = dma.done [#allocation3], 2048
    $region21: #{tpu_custom_call.1} parent=1 // pred_fallthru
      _
    // Predicated region
    $region22: #{tpu_custom_call.1} parent=1 // pred_check
      _
    $region23: #{tpu_custom_call.1} parent=1 // pred_check_branch
      %65 = sbr.rel (0) target = $region25
    $region24: #{tpu_custom_call.1} parent=1 // pred_region
      %66 = dma.done [#allocation6], 2048
    $region25: #{tpu_custom_call.1} parent=1 // pred_fallthru
      _
    // Predicated region
    $region26: #{tpu_custom_call.1} parent=1 // pred_check
      _
    $region27: #{tpu_custom_call.1} parent=1 // pred_check_branch
      %68 = sbr.rel (0) target = $region29
    $region28: #{tpu_custom_call.1} parent=1 // pred_region
      %69 = dma.done [#allocation6], 2048
    $region29: #{tpu_custom_call.1} parent=1 // pred_fallthru
      _
    // Predicated region
    $region30: #{tpu_custom_call.1} parent=1 // pred_check
      _
    $region31: #{tpu_custom_call.1} parent=1 // pred_check_branch
      %71 = sbr.rel (0) target = $region33
    $region32: #{tpu_custom_call.1} parent=1 // pred_region
      %72 = dma.done [#allocation9], 2048
    $region33: #{tpu_custom_call.1} parent=1 // pred_fallthru
      _
    %v73 = vld [vmem:[#allocation2] sm:$0xff]
    %v74 = vld [vmem:[#allocation2 + $0x8] sm:$0xff]
    %v75 = vld [vmem:[#allocation2 + $0x10] sm:$0xff]
    %v76 = vld [vmem:[#allocation2 + $0x18] sm:$0xff]
    %v77 = vld [vmem:[#allocation2 + $0x20] sm:$0xff]
    %v78 = vld [vmem:[#allocation2 + $0x28] sm:$0xff]
    %v79 = vld [vmem:[#allocation2 + $0x30] sm:$0xff]
    %v80 = vld [vmem:[#allocation2 + $0x38] sm:$0xff]
    %v81 = vld [vmem:[#allocation2 + $0x40] sm:$0xff]
    %v82 = vld [vmem:[#allocation2 + $0x48] sm:$0xff]
    %v83 = vld [vmem:[#allocation2 + $0x50] sm:$0xff]
    %v84 = vld [vmem:[#allocation2 + $0x58] sm:$0xff]
    %v85 = vld [vmem:[#allocation2 + $0x60] sm:$0xff]
    %v86 = vld [vmem:[#allocation2 + $0x68] sm:$0xff]
    %v87 = vld [vmem:[#allocation2 + $0x70] sm:$0xff]
    %v88 = vld [vmem:[#allocation2 + $0x78] sm:$0xff]
    %v89 = vld [vmem:[#allocation5] sm:$0xff]
    %v90 = vld [vmem:[#allocation5 + $0x8] sm:$0xff]
    %v91 = vld [vmem:[#allocation5 + $0x10] sm:$0xff]
    %v92 = vld [vmem:[#allocation5 + $0x18] sm:$0xff]
    %v93 = vld [vmem:[#allocation5 + $0x20] sm:$0xff]
    %v94 = vld [vmem:[#allocation5 + $0x28] sm:$0xff]
    %v95 = vld [vmem:[#allocation5 + $0x30] sm:$0xff]
    %v96 = vld [vmem:[#allocation5 + $0x38] sm:$0xff]
    %v97 = vld [vmem:[#allocation5 + $0x40] sm:$0xff]
    %v98 = vld [vmem:[#allocation5 + $0x48] sm:$0xff]
    %v99 = vld [vmem:[#allocation5 + $0x50] sm:$0xff]
    %v100 = vld [vmem:[#allocation5 + $0x58] sm:$0xff]
    %v101 = vld [vmem:[#allocation5 + $0x60] sm:$0xff]
    %v102 = vld [vmem:[#allocation5 + $0x68] sm:$0xff]
    %v103 = vld [vmem:[#allocation5 + $0x70] sm:$0xff]
    %v104 = vld [vmem:[#allocation5 + $0x78] sm:$0xff]
    %105 = vmatprep.subr.mxu0 0.0
    %106 = vmatpush1.msra.mxu0 %v104
    %107 = vmatprep.subr.mxu0 0.0
    %108 = vmatpush1.msra.mxu0 %v103
    %109 = vmatprep.subr.mxu0 0.0
    %110 = vmatpush1.msra.mxu0 %v102
    %111 = vmatprep.subr.mxu0 0.0
    %112 = vmatpush1.msra.mxu0 %v101
    %113 = vmatprep.subr.mxu0 0.0
    %114 = vmatpush1.msra.mxu0 %v100
    %115 = vmatprep.subr.mxu0 0.0
    %116 = vmatpush1.msra.mxu0 %v99
    %117 = vmatprep.subr.mxu0 0.0
    %118 = vmatpush1.msra.mxu0 %v98
    %119 = vmatprep.subr.mxu0 0.0
    %120 = vmatpush1.msra.mxu0 %v97
    %121 = vmatprep.subr.mxu0 0.0
    %122 = vmatpush1.msra.mxu0 %v96
    %123 = vmatprep.subr.mxu0 0.0
    %124 = vmatpush1.msra.mxu0 %v95
    %125 = vmatprep.subr.mxu0 0.0
    %126 = vmatpush1.msra.mxu0 %v94
    %127 = vmatprep.subr.mxu0 0.0
    %128 = vmatpush1.msra.mxu0 %v93
    %129 = vmatprep.subr.mxu0 0.0
    %130 = vmatpush1.msra.mxu0 %v92
    %131 = vmatprep.subr.mxu0 0.0
    %132 = vmatpush1.msra.mxu0 %v91
    %133 = vmatprep.subr.mxu0 0.0
    %134 = vmatpush1.msra.mxu0 %v90
    %135 = vmatprep.subr.mxu0 0.0
    %136 = vmatpush1.msra.mxu0 %v89
    %137 = vmatprep.subr.mxu0 0.0
    %138 = vmatpush2.msra.mxu0 0.0
    %139 = vmatprep.subr.mxu0 0.0
    %140 = vmatpush2.msra.mxu0 0.0
    %141 = vmatprep.subr.mxu0 0.0
    %142 = vmatpush2.msra.mxu0 0.0
    %143 = vmatprep.subr.mxu0 0.0
    %144 = vmatpush2.msra.mxu0 0.0
    %145 = vmatprep.subr.mxu0 0.0
    %146 = vmatpush2.msra.mxu0 0.0
    %147 = vmatprep.subr.mxu0 0.0
    %148 = vmatpush2.msra.mxu0 0.0
    %149 = vmatprep.subr.mxu0 0.0
    %150 = vmatpush2.msra.mxu0 0.0
    %151 = vmatprep.subr.mxu0 0.0
    %152 = vmatpush2.msra.mxu0 0.0
    %153 = vmatprep.subr.mxu0 0.0
    %154 = vmatpush2.msra.mxu0 0.0
    %155 = vmatprep.subr.mxu0 0.0
    %156 = vmatpush2.msra.mxu0 0.0
    %157 = vmatprep.subr.mxu0 0.0
    %158 = vmatpush2.msra.mxu0 0.0
    %159 = vmatprep.subr.mxu0 0.0
    %160 = vmatpush2.msra.mxu0 0.0
    %161 = vmatprep.subr.mxu0 0.0
    %162 = vmatpush2.msra.mxu0 0.0
    %163 = vmatprep.subr.mxu0 0.0
    %164 = vmatpush2.msra.mxu0 0.0
    %165 = vmatprep.subr.mxu0 0.0
    %166 = vmatpush2.msra.mxu0 0.0
    %167 = vmatprep.subr.mxu0 0.0
    %168 = vmatpush2.msra.mxu0 0.0
    %169 = vmatprep.mubr.f32.mxu0 0.0
    %170 = vmatmul.mubr.f32.gmra.mxu0 %v73
    %v171 = vpop.f32.mrf.mxu0
    %v172 = vadd.f32 0.0, %v171
    %v173 = vpop.f32.mrf.mxu0
    %174 = vmatprep.mubr.f32.mxu0 0.0
    %175 = vmatmul.mubr.f32.gmra.mxu0 %v74
    %v176 = vpop.f32.mrf.mxu0
    %v177 = vadd.f32 0.0, %v176
    %v178 = vpop.f32.mrf.mxu0
    %179 = vmatprep.mubr.f32.mxu0 0.0
    %180 = vmatmul.mubr.f32.gmra.mxu0 %v75
    %v181 = vpop.f32.mrf.mxu0
    %v182 = vadd.f32 0.0, %v181
    %v183 = vpop.f32.mrf.mxu0
    %184 = vmatprep.mubr.f32.mxu0 0.0
    %185 = vmatmul.mubr.f32.gmra.mxu0 %v76
    %v186 = vpop.f32.mrf.mxu0
    %v187 = vadd.f32 0.0, %v186
    %v188 = vpop.f32.mrf.mxu0
    %189 = vmatprep.mubr.f32.mxu0 0.0
    %190 = vmatmul.mubr.f32.gmra.mxu0 %v77
    %v191 = vpop.f32.mrf.mxu0
    %v192 = vadd.f32 0.0, %v191
    %v193 = vpop.f32.mrf.mxu0
    %194 = vmatprep.mubr.f32.mxu0 0.0
    %195 = vmatmul.mubr.f32.gmra.mxu0 %v78
    %v196 = vpop.f32.mrf.mxu0
    %v197 = vadd.f32 0.0, %v196
    %v198 = vpop.f32.mrf.mxu0
    %199 = vmatprep.mubr.f32.mxu0 0.0
    %200 = vmatmul.mubr.f32.gmra.mxu0 %v79
    %v201 = vpop.f32.mrf.mxu0
    %v202 = vadd.f32 0.0, %v201
    %v203 = vpop.f32.mrf.mxu0
    %204 = vmatprep.mubr.f32.mxu0 0.0
    %205 = vmatmul.mubr.f32.gmra.mxu0 %v80
    %v206 = vpop.f32.mrf.mxu0
    %v207 = vadd.f32 0.0, %v206
    %v208 = vpop.f32.mrf.mxu0
    %209 = vmatprep.mubr.f32.mxu0 0.0
    %210 = vmatmul.mubr.f32.gmra.mxu0 %v81
    %v211 = vpop.f32.mrf.mxu0
    %v212 = vadd.f32 0.0, %v211
    %v213 = vpop.f32.mrf.mxu0
    %214 = vmatprep.mubr.f32.mxu0 0.0
    %215 = vmatmul.mubr.f32.gmra.mxu0 %v82
    %v216 = vpop.f32.mrf.mxu0
    %v217 = vadd.f32 0.0, %v216
    %v218 = vpop.f32.mrf.mxu0
    %219 = vmatprep.mubr.f32.mxu0 0.0
    %220 = vmatmul.mubr.f32.gmra.mxu0 %v83
    %v221 = vpop.f32.mrf.mxu0
    %v222 = vadd.f32 0.0, %v221
    %v223 = vpop.f32.mrf.mxu0
    %224 = vmatprep.mubr.f32.mxu0 0.0
    %225 = vmatmul.mubr.f32.gmra.mxu0 %v84
    %v226 = vpop.f32.mrf.mxu0
    %v227 = vadd.f32 0.0, %v226
    %v228 = vpop.f32.mrf.mxu0
    %229 = vmatprep.mubr.f32.mxu0 0.0
    %230 = vmatmul.mubr.f32.gmra.mxu0 %v85
    %v231 = vpop.f32.mrf.mxu0
    %v232 = vadd.f32 0.0, %v231
    %v233 = vpop.f32.mrf.mxu0
    %234 = vmatprep.mubr.f32.mxu0 0.0
    %235 = vmatmul.mubr.f32.gmra.mxu0 %v86
    %v236 = vpop.f32.mrf.mxu0
    %v237 = vadd.f32 0.0, %v236
    %v238 = vpop.f32.mrf.mxu0
    %239 = vmatprep.mubr.f32.mxu0 0.0
    %240 = vmatmul.mubr.f32.gmra.mxu0 %v87
    %v241 = vpop.f32.mrf.mxu0
    %v242 = vadd.f32 0.0, %v241
    %v243 = vpop.f32.mrf.mxu0
    %244 = vmatprep.mubr.f32.mxu0 0.0
    %245 = vmatmul.mubr.f32.gmra.mxu0 %v88
    %v246 = vpop.f32.mrf.mxu0
    %v247 = vadd.f32 0.0, %v246
    %v248 = vpop.f32.mrf.mxu0
    %249 = vdwg.mxu0
    %v250 = vld [vmem:[#allocation7] sm:$0xff]
    %v251 = vld [vmem:[#allocation7 + $0x8] sm:$0xff]
    %v252 = vld [vmem:[#allocation7 + $0x10] sm:$0xff]
    %v253 = vld [vmem:[#allocation7 + $0x18] sm:$0xff]
    %v254 = vld [vmem:[#allocation7 + $0x20] sm:$0xff]
    %v255 = vld [vmem:[#allocation7 + $0x28] sm:$0xff]
    %v256 = vld [vmem:[#allocation7 + $0x30] sm:$0xff]
    %v257 = vld [vmem:[#allocation7 + $0x38] sm:$0xff]
    %v258 = vld [vmem:[#allocation7 + $0x40] sm:$0xff]
    %v259 = vld [vmem:[#allocation7 + $0x48] sm:$0xff]
    %v260 = vld [vmem:[#allocation7 + $0x50] sm:$0xff]
    %v261 = vld [vmem:[#allocation7 + $0x58] sm:$0xff]
    %v262 = vld [vmem:[#allocation7 + $0x60] sm:$0xff]
    %v263 = vld [vmem:[#allocation7 + $0x68] sm:$0xff]
    %v264 = vld [vmem:[#allocation7 + $0x70] sm:$0xff]
    %v265 = vld [vmem:[#allocation7 + $0x78] sm:$0xff]
    %266 = vmatprep.subr.mxu0 0.0
    %267 = vmatpush1.msra.mxu0 %v265
    %268 = vmatprep.subr.mxu0 0.0
    %269 = vmatpush1.msra.mxu0 %v264
    %270 = vmatprep.subr.mxu0 0.0
    %271 = vmatpush1.msra.mxu0 %v263
    %272 = vmatprep.subr.mxu0 0.0
    %273 = vmatpush1.msra.mxu0 %v262
    %274 = vmatprep.subr.mxu0 0.0
    %275 = vmatpush1.msra.mxu0 %v261
    %276 = vmatprep.subr.mxu0 0.0
    %277 = vmatpush1.msra.mxu0 %v260
    %278 = vmatprep.subr.mxu0 0.0
    %279 = vmatpush1.msra.mxu0 %v259
    %280 = vmatprep.subr.mxu0 0.0
    %281 = vmatpush1.msra.mxu0 %v258
    %282 = vmatprep.subr.mxu0 0.0
    %283 = vmatpush1.msra.mxu0 %v257
    %284 = vmatprep.subr.mxu0 0.0
    %285 = vmatpush1.msra.mxu0 %v256
    %286 = vmatprep.subr.mxu0 0.0
    %287 = vmatpush1.msra.mxu0 %v255
    %288 = vmatprep.subr.mxu0 0.0
    %289 = vmatpush1.msra.mxu0 %v254
    %290 = vmatprep.subr.mxu0 0.0
    %291 = vmatpush1.msra.mxu0 %v253
    %292 = vmatprep.subr.mxu0 0.0
    %293 = vmatpush1.msra.mxu0 %v252
    %294 = vmatprep.subr.mxu0 0.0
    %295 = vmatpush1.msra.mxu0 %v251
    %296 = vmatprep.subr.mxu0 0.0
    %297 = vmatpush1.msra.mxu0 %v250
    %298 = vmatprep.subr.mxu0 0.0
    %299 = vmatpush2.msra.mxu0 0.0
    %300 = vmatprep.subr.mxu0 0.0
    %301 = vmatpush2.msra.mxu0 0.0
    %302 = vmatprep.subr.mxu0 0.0
    %303 = vmatpush2.msra.mxu0 0.0
    %304 = vmatprep.subr.mxu0 0.0
    %305 = vmatpush2.msra.mxu0 0.0
    %306 = vmatprep.subr.mxu0 0.0
    %307 = vmatpush2.msra.mxu0 0.0
    %308 = vmatprep.subr.mxu0 0.0
    %309 = vmatpush2.msra.mxu0 0.0
    %310 = vmatprep.subr.mxu0 0.0
    %311 = vmatpush2.msra.mxu0 0.0
    %312 = vmatprep.subr.mxu0 0.0
    %313 = vmatpush2.msra.mxu0 0.0
    %314 = vmatprep.subr.mxu0 0.0
    %315 = vmatpush2.msra.mxu0 0.0
    %316 = vmatprep.subr.mxu0 0.0
    %317 = vmatpush2.msra.mxu0 0.0
    %318 = vmatprep.subr.mxu0 0.0
    %319 = vmatpush2.msra.mxu0 0.0
    %320 = vmatprep.subr.mxu0 0.0
    %321 = vmatpush2.msra.mxu0 0.0
    %322 = vmatprep.subr.mxu0 0.0
    %323 = vmatpush2.msra.mxu0 0.0
    %324 = vmatprep.subr.mxu0 0.0
    %325 = vmatpush2.msra.mxu0 0.0
    %326 = vmatprep.subr.mxu0 0.0
    %327 = vmatpush2.msra.mxu0 0.0
    %328 = vmatprep.subr.mxu0 0.0
    %329 = vmatpush2.msra.mxu0 0.0
    %330 = vmatprep.mubr.f32.mxu0 0.0
    %331 = vmatmul.mubr.f32.gmra.mxu0 %v73
    %v332 = vpop.f32.mrf.mxu0
    %v333 = vadd.f32 0.0, %v332
    %v334 = vpop.f32.mrf.mxu0
    %335 = vmatprep.mubr.f32.mxu0 0.0
    %336 = vmatmul.mubr.f32.gmra.mxu0 %v74
    %v337 = vpop.f32.mrf.mxu0
    %v338 = vadd.f32 0.0, %v337
    %v339 = vpop.f32.mrf.mxu0
    %340 = vmatprep.mubr.f32.mxu0 0.0
    %341 = vmatmul.mubr.f32.gmra.mxu0 %v75
    %v342 = vpop.f32.mrf.mxu0
    %v343 = vadd.f32 0.0, %v342
    %v344 = vpop.f32.mrf.mxu0
    %345 = vmatprep.mubr.f32.mxu0 0.0
    %346 = vmatmul.mubr.f32.gmra.mxu0 %v76
    %v347 = vpop.f32.mrf.mxu0
    %v348 = vadd.f32 0.0, %v347
    %v349 = vpop.f32.mrf.mxu0
    %350 = vmatprep.mubr.f32.mxu0 0.0
    %351 = vmatmul.mubr.f32.gmra.mxu0 %v77
    %v352 = vpop.f32.mrf.mxu0
    %v353 = vadd.f32 0.0, %v352
    %v354 = vpop.f32.mrf.mxu0
    %355 = vmatprep.mubr.f32.mxu0 0.0
    %356 = vmatmul.mubr.f32.gmra.mxu0 %v78
    %v357 = vpop.f32.mrf.mxu0
    %v358 = vadd.f32 0.0, %v357
    %v359 = vpop.f32.mrf.mxu0
    %360 = vmatprep.mubr.f32.mxu0 0.0
    %361 = vmatmul.mubr.f32.gmra.mxu0 %v79
    %v362 = vpop.f32.mrf.mxu0
    %v363 = vadd.f32 0.0, %v362
    %v364 = vpop.f32.mrf.mxu0
    %365 = vmatprep.mubr.f32.mxu0 0.0
    %366 = vmatmul.mubr.f32.gmra.mxu0 %v80
    %v367 = vpop.f32.mrf.mxu0
    %v368 = vadd.f32 0.0, %v367
    %v369 = vpop.f32.mrf.mxu0
    %370 = vmatprep.mubr.f32.mxu0 0.0
    %371 = vmatmul.mubr.f32.gmra.mxu0 %v81
    %v372 = vpop.f32.mrf.mxu0
    %v373 = vadd.f32 0.0, %v372
    %v374 = vpop.f32.mrf.mxu0
    %375 = vmatprep.mubr.f32.mxu0 0.0
    %376 = vmatmul.mubr.f32.gmra.mxu0 %v82
    %v377 = vpop.f32.mrf.mxu0
    %v378 = vadd.f32 0.0, %v377
    %v379 = vpop.f32.mrf.mxu0
    %380 = vmatprep.mubr.f32.mxu0 0.0
    %381 = vmatmul.mubr.f32.gmra.mxu0 %v83
    %v382 = vpop.f32.mrf.mxu0
    %v383 = vadd.f32 0.0, %v382
    %v384 = vpop.f32.mrf.mxu0
    %385 = vmatprep.mubr.f32.mxu0 0.0
    %386 = vmatmul.mubr.f32.gmra.mxu0 %v84
    %v387 = vpop.f32.mrf.mxu0
    %v388 = vadd.f32 0.0, %v387
    %v389 = vpop.f32.mrf.mxu0
    %390 = vmatprep.mubr.f32.mxu0 0.0
    %391 = vmatmul.mubr.f32.gmra.mxu0 %v85
    %v392 = vpop.f32.mrf.mxu0
    %v393 = vadd.f32 0.0, %v392
    %v394 = vpop.f32.mrf.mxu0
    %395 = vmatprep.mubr.f32.mxu0 0.0
    %396 = vmatmul.mubr.f32.gmra.mxu0 %v86
    %v397 = vpop.f32.mrf.mxu0
    %v398 = vadd.f32 0.0, %v397
    %v399 = vpop.f32.mrf.mxu0
    %400 = vmatprep.mubr.f32.mxu0 0.0
    %401 = vmatmul.mubr.f32.gmra.mxu0 %v87
    %v402 = vpop.f32.mrf.mxu0
    %v403 = vadd.f32 0.0, %v402
    %v404 = vpop.f32.mrf.mxu0
    %405 = vmatprep.mubr.f32.mxu0 0.0
    %406 = vmatmul.mubr.f32.gmra.mxu0 %v88
    %v407 = vpop.f32.mrf.mxu0
    %v408 = vadd.f32 0.0, %v407
    %v409 = vpop.f32.mrf.mxu0
    %410 = vdwg.mxu0
    %v411 = vxor.u32 %v172, 2147483648
    %v412 = vxor.u32 %v177, 2147483648
    %v413 = vxor.u32 %v182, 2147483648
    %v414 = vxor.u32 %v187, 2147483648
    %v415 = vxor.u32 %v192, 2147483648
    %v416 = vxor.u32 %v197, 2147483648
    %v417 = vxor.u32 %v202, 2147483648
    %v418 = vxor.u32 %v207, 2147483648
    %v419 = vxor.u32 %v212, 2147483648
    %v420 = vxor.u32 %v217, 2147483648
    %v421 = vxor.u32 %v222, 2147483648
    %v422 = vxor.u32 %v227, 2147483648
    %v423 = vxor.u32 %v232, 2147483648
    %v424 = vxor.u32 %v237, 2147483648
    %v425 = vxor.u32 %v242, 2147483648
    %v426 = vxor.u32 %v247, 2147483648
    %v427 = vmul.f32 %v411, 1.442695
    %v428 = vpow.pop %v427
    %v429 = vmul.f32 %v412, 1.442695
    %v430 = vpow.pop %v429
    %v431 = vmul.f32 %v413, 1.442695
    %v432 = vpow.pop %v431
    %v433 = vmul.f32 %v414, 1.442695
    %v434 = vpow.pop %v433
    %v435 = vmul.f32 %v415, 1.442695
    %v436 = vpow.pop %v435
    %v437 = vmul.f32 %v416, 1.442695
    %v438 = vpow.pop %v437
    %v439 = vmul.f32 %v417, 1.442695
    %v440 = vpow.pop %v439
    %v441 = vmul.f32 %v418, 1.442695
    %v442 = vpow.pop %v441
    %v443 = vmul.f32 %v419, 1.442695
    %v444 = vpow.pop %v443
    %v445 = vmul.f32 %v420, 1.442695
    %v446 = vpow.pop %v445
    %v447 = vmul.f32 %v421, 1.442695
    %v448 = vpow.pop %v447
    %v449 = vmul.f32 %v422, 1.442695
    %v450 = vpow.pop %v449
    %v451 = vmul.f32 %v423, 1.442695
    %v452 = vpow.pop %v451
    %v453 = vmul.f32 %v424, 1.442695
    %v454 = vpow.pop %v453
    %v455 = vmul.f32 %v425, 1.442695
    %v456 = vpow.pop %v455
    %v457 = vmul.f32 %v426, 1.442695
    %v458 = vpow.pop %v457
    %v459 = vadd.f32 %v428, 1.0
    %v460 = vadd.f32 %v430, 1.0
    %v461 = vadd.f32 %v432, 1.0
    %v462 = vadd.f32 %v434, 1.0
    %v463 = vadd.f32 %v436, 1.0
    %v464 = vadd.f32 %v438, 1.0
    %v465 = vadd.f32 %v440, 1.0
    %v466 = vadd.f32 %v442, 1.0
    %v467 = vadd.f32 %v444, 1.0
    %v468 = vadd.f32 %v446, 1.0
    %v469 = vadd.f32 %v448, 1.0
    %v470 = vadd.f32 %v450, 1.0
    %v471 = vadd.f32 %v452, 1.0
    %v472 = vadd.f32 %v454, 1.0
    %v473 = vadd.f32 %v456, 1.0
    %v474 = vadd.f32 %v458, 1.0
    %v475 = vrcp.pop %v459
    %v476 = vmul.f32 1.0, %v475
    %v477 = vrcp.pop %v460
    %v478 = vmul.f32 1.0, %v477
    %v479 = vrcp.pop %v461
    %v480 = vmul.f32 1.0, %v479
    %v481 = vrcp.pop %v462
    %v482 = vmul.f32 1.0, %v481
    %v483 = vrcp.pop %v463
    %v484 = vmul.f32 1.0, %v483
    %v485 = vrcp.pop %v464
    %v486 = vmul.f32 1.0, %v485
    %v487 = vrcp.pop %v465
    %v488 = vmul.f32 1.0, %v487
    %v489 = vrcp.pop %v466
    %v490 = vmul.f32 1.0, %v489
    %v491 = vrcp.pop %v467
    %v492 = vmul.f32 1.0, %v491
    %v493 = vrcp.pop %v468
    %v494 = vmul.f32 1.0, %v493
    %v495 = vrcp.pop %v469
    %v496 = vmul.f32 1.0, %v495
    %v497 = vrcp.pop %v470
    %v498 = vmul.f32 1.0, %v497
    %v499 = vrcp.pop %v471
    %v500 = vmul.f32 1.0, %v499
    %v501 = vrcp.pop %v472
    %v502 = vmul.f32 1.0, %v501
    %v503 = vrcp.pop %v473
    %v504 = vmul.f32 1.0, %v503
    %v505 = vrcp.pop %v474
    %v506 = vmul.f32 1.0, %v505
    %v507 = vmul.f32 %v172, %v476
    %v508 = vmul.f32 %v177, %v478
    %v509 = vmul.f32 %v182, %v480
    %v510 = vmul.f32 %v187, %v482
    %v511 = vmul.f32 %v192, %v484
    %v512 = vmul.f32 %v197, %v486
    %v513 = vmul.f32 %v202, %v488
    %v514 = vmul.f32 %v207, %v490
    %v515 = vmul.f32 %v212, %v492
    %v516 = vmul.f32 %v217, %v494
    %v517 = vmul.f32 %v222, %v496
    %v518 = vmul.f32 %v227, %v498
    %v519 = vmul.f32 %v232, %v500
    %v520 = vmul.f32 %v237, %v502
    %v521 = vmul.f32 %v242, %v504
    %v522 = vmul.f32 %v247, %v506
    %v523 = vmul.f32 %v507, %v333
    %v524 = vmul.f32 %v508, %v338
    %v525 = vmul.f32 %v509, %v343
    %v526 = vmul.f32 %v510, %v348
    %v527 = vmul.f32 %v511, %v353
    %v528 = vmul.f32 %v512, %v358
    %v529 = vmul.f32 %v513, %v363
    %v530 = vmul.f32 %v514, %v368
    %v531 = vmul.f32 %v515, %v373
    %v532 = vmul.f32 %v516, %v378
    %v533 = vmul.f32 %v517, %v383
    %v534 = vmul.f32 %v518, %v388
    %v535 = vmul.f32 %v519, %v393
    %v536 = vmul.f32 %v520, %v398
    %v537 = vmul.f32 %v521, %v403
    %v538 = vmul.f32 %v522, %v408
    %v539 = vld [vmem:[#allocation8] sm:$0xff]
    %v540 = vld [vmem:[#allocation8 + $0x8] sm:$0xff]
    %v541 = vld [vmem:[#allocation8 + $0x10] sm:$0xff]
    %v542 = vld [vmem:[#allocation8 + $0x18] sm:$0xff]
    %v543 = vld [vmem:[#allocation8 + $0x20] sm:$0xff]
    %v544 = vld [vmem:[#allocation8 + $0x28] sm:$0xff]
    %v545 = vld [vmem:[#allocation8 + $0x30] sm:$0xff]
    %v546 = vld [vmem:[#allocation8 + $0x38] sm:$0xff]
    %v547 = vld [vmem:[#allocation8 + $0x40] sm:$0xff]
    %v548 = vld [vmem:[#allocation8 + $0x48] sm:$0xff]
    %v549 = vld [vmem:[#allocation8 + $0x50] sm:$0xff]
    %v550 = vld [vmem:[#allocation8 + $0x58] sm:$0xff]
    %v551 = vld [vmem:[#allocation8 + $0x60] sm:$0xff]
    %v552 = vld [vmem:[#allocation8 + $0x68] sm:$0xff]
    %v553 = vld [vmem:[#allocation8 + $0x70] sm:$0xff]
    %v554 = vld [vmem:[#allocation8 + $0x78] sm:$0xff]
    %555 = vmatprep.subr.mxu0 0.0
    %556 = vmatpush1.msra.mxu0 %v554
    %557 = vmatprep.subr.mxu0 0.0
    %558 = vmatpush1.msra.mxu0 %v553
    %559 = vmatprep.subr.mxu0 0.0
    %560 = vmatpush1.msra.mxu0 %v552
    %561 = vmatprep.subr.mxu0 0.0
    %562 = vmatpush1.msra.mxu0 %v551
    %563 = vmatprep.subr.mxu0 0.0
    %564 = vmatpush1.msra.mxu0 %v550
    %565 = vmatprep.subr.mxu0 0.0
    %566 = vmatpush1.msra.mxu0 %v549
    %567 = vmatprep.subr.mxu0 0.0
    %568 = vmatpush1.msra.mxu0 %v548
    %569 = vmatprep.subr.mxu0 0.0
    %570 = vmatpush1.msra.mxu0 %v547
    %571 = vmatprep.subr.mxu0 0.0
    %572 = vmatpush1.msra.mxu0 %v546
    %573 = vmatprep.subr.mxu0 0.0
    %574 = vmatpush1.msra.mxu0 %v545
    %575 = vmatprep.subr.mxu0 0.0
    %576 = vmatpush1.msra.mxu0 %v544
    %577 = vmatprep.subr.mxu0 0.0
    %578 = vmatpush1.msra.mxu0 %v543
    %579 = vmatprep.subr.mxu0 0.0
    %580 = vmatpush1.msra.mxu0 %v542
    %581 = vmatprep.subr.mxu0 0.0
    %582 = vmatpush1.msra.mxu0 %v541
    %583 = vmatprep.subr.mxu0 0.0
    %584 = vmatpush1.msra.mxu0 %v540
    %585 = vmatprep.subr.mxu0 0.0
    %586 = vmatpush1.msra.mxu0 %v539
    %587 = vmatprep.subr.mxu0 0.0
    %588 = vmatpush2.msra.mxu0 0.0
    %589 = vmatprep.subr.mxu0 0.0
    %590 = vmatpush2.msra.mxu0 0.0
    %591 = vmatprep.subr.mxu0 0.0
    %592 = vmatpush2.msra.mxu0 0.0
    %593 = vmatprep.subr.mxu0 0.0
    %594 = vmatpush2.msra.mxu0 0.0
    %595 = vmatprep.subr.mxu0 0.0
    %596 = vmatpush2.msra.mxu0 0.0
    %597 = vmatprep.subr.mxu0 0.0
    %598 = vmatpush2.msra.mxu0 0.0
    %599 = vmatprep.subr.mxu0 0.0
    %600 = vmatpush2.msra.mxu0 0.0
    %601 = vmatprep.subr.mxu0 0.0
    %602 = vmatpush2.msra.mxu0 0.0
    %603 = vmatprep.subr.mxu0 0.0
    %604 = vmatpush2.msra.mxu0 0.0
    %605 = vmatprep.subr.mxu0 0.0
    %606 = vmatpush2.msra.mxu0 0.0
    %607 = vmatprep.subr.mxu0 0.0
    %608 = vmatpush2.msra.mxu0 0.0
    %609 = vmatprep.subr.mxu0 0.0
    %610 = vmatpush2.msra.mxu0 0.0
    %611 = vmatprep.subr.mxu0 0.0
    %612 = vmatpush2.msra.mxu0 0.0
    %613 = vmatprep.subr.mxu0 0.0
    %614 = vmatpush2.msra.mxu0 0.0
    %615 = vmatprep.subr.mxu0 0.0
    %616 = vmatpush2.msra.mxu0 0.0
    %617 = vmatprep.subr.mxu0 0.0
    %618 = vmatpush2.msra.mxu0 0.0
    %619 = vmatprep.mubr.f32.mxu0 0.0
    %620 = vmatmul.mubr.f32.gmra.mxu0 %v523
    %v621 = vpop.f32.mrf.mxu0
    %v622 = vadd.f32 0.0, %v621
    %v623 = vpop.f32.mrf.mxu0
    %624 = vmatprep.mubr.f32.mxu0 0.0
    %625 = vmatmul.mubr.f32.gmra.mxu0 %v524
    %v626 = vpop.f32.mrf.mxu0
    %v627 = vadd.f32 0.0, %v626
    %v628 = vpop.f32.mrf.mxu0
    %629 = vmatprep.mubr.f32.mxu0 0.0
    %630 = vmatmul.mubr.f32.gmra.mxu0 %v525
    %v631 = vpop.f32.mrf.mxu0
    %v632 = vadd.f32 0.0, %v631
    %v633 = vpop.f32.mrf.mxu0
    %634 = vmatprep.mubr.f32.mxu0 0.0
    %635 = vmatmul.mubr.f32.gmra.mxu0 %v526
    %v636 = vpop.f32.mrf.mxu0
    %v637 = vadd.f32 0.0, %v636
    %v638 = vpop.f32.mrf.mxu0
    %639 = vmatprep.mubr.f32.mxu0 0.0
    %640 = vmatmul.mubr.f32.gmra.mxu0 %v527
    %v641 = vpop.f32.mrf.mxu0
    %v642 = vadd.f32 0.0, %v641
    %v643 = vpop.f32.mrf.mxu0
    %644 = vmatprep.mubr.f32.mxu0 0.0
    %645 = vmatmul.mubr.f32.gmra.mxu0 %v528
    %v646 = vpop.f32.mrf.mxu0
    %v647 = vadd.f32 0.0, %v646
    %v648 = vpop.f32.mrf.mxu0
    %649 = vmatprep.mubr.f32.mxu0 0.0
    %650 = vmatmul.mubr.f32.gmra.mxu0 %v529
    %v651 = vpop.f32.mrf.mxu0
    %v652 = vadd.f32 0.0, %v651
    %v653 = vpop.f32.mrf.mxu0
    %654 = vmatprep.mubr.f32.mxu0 0.0
    %655 = vmatmul.mubr.f32.gmra.mxu0 %v530
    %v656 = vpop.f32.mrf.mxu0
    %v657 = vadd.f32 0.0, %v656
    %v658 = vpop.f32.mrf.mxu0
    %659 = vmatprep.mubr.f32.mxu0 0.0
    %660 = vmatmul.mubr.f32.gmra.mxu0 %v531
    %v661 = vpop.f32.mrf.mxu0
    %v662 = vadd.f32 0.0, %v661
    %v663 = vpop.f32.mrf.mxu0
    %664 = vmatprep.mubr.f32.mxu0 0.0
    %665 = vmatmul.mubr.f32.gmra.mxu0 %v532
    %v666 = vpop.f32.mrf.mxu0
    %v667 = vadd.f32 0.0, %v666
    %v668 = vpop.f32.mrf.mxu0
    %669 = vmatprep.mubr.f32.mxu0 0.0
    %670 = vmatmul.mubr.f32.gmra.mxu0 %v533
    %v671 = vpop.f32.mrf.mxu0
    %v672 = vadd.f32 0.0, %v671
    %v673 = vpop.f32.mrf.mxu0
    %674 = vmatprep.mubr.f32.mxu0 0.0
    %675 = vmatmul.mubr.f32.gmra.mxu0 %v534
    %v676 = vpop.f32.mrf.mxu0
    %v677 = vadd.f32 0.0, %v676
    %v678 = vpop.f32.mrf.mxu0
    %679 = vmatprep.mubr.f32.mxu0 0.0
    %680 = vmatmul.mubr.f32.gmra.mxu0 %v535
    %v681 = vpop.f32.mrf.mxu0
    %v682 = vadd.f32 0.0, %v681
    %v683 = vpop.f32.mrf.mxu0
    %684 = vmatprep.mubr.f32.mxu0 0.0
    %685 = vmatmul.mubr.f32.gmra.mxu0 %v536
    %v686 = vpop.f32.mrf.mxu0
    %v687 = vadd.f32 0.0, %v686
    %v688 = vpop.f32.mrf.mxu0
    %689 = vmatprep.mubr.f32.mxu0 0.0
    %690 = vmatmul.mubr.f32.gmra.mxu0 %v537
    %v691 = vpop.f32.mrf.mxu0
    %v692 = vadd.f32 0.0, %v691
    %v693 = vpop.f32.mrf.mxu0
    %694 = vmatprep.mubr.f32.mxu0 0.0
    %695 = vmatmul.mubr.f32.gmra.mxu0 %v538
    %v696 = vpop.f32.mrf.mxu0
    %v697 = vadd.f32 0.0, %v696
    %v698 = vpop.f32.mrf.mxu0
    %699 = vdwg.mxu0
    %p700 = scmp.eq.s32.totalorder 0, 0
    // Predicated region
    $region34: #{tpu_custom_call.1} parent=1 // pred_check
      %p701 = pneg %p700
    $region35: #{tpu_custom_call.1} parent=1 // pred_check_branch
      %703 = sbr.rel (%p701) target = $region37
    $region36: #{tpu_custom_call.1} parent=1 // pred_region
      %704 = vst [vmem:[#allocation10] sm:$0xff] %v622
      %705 = vst [vmem:[#allocation10 + $0x8] sm:$0xff] %v627
      %706 = vst [vmem:[#allocation10 + $0x10] sm:$0xff] %v632
      %707 = vst [vmem:[#allocation10 + $0x18] sm:$0xff] %v637
      %708 = vst [vmem:[#allocation10 + $0x20] sm:$0xff] %v642
      %709 = vst [vmem:[#allocation10 + $0x28] sm:$0xff] %v647
      %710 = vst [vmem:[#allocation10 + $0x30] sm:$0xff] %v652
      %711 = vst [vmem:[#allocation10 + $0x38] sm:$0xff] %v657
      %712 = vst [vmem:[#allocation10 + $0x40] sm:$0xff] %v662
      %713 = vst [vmem:[#allocation10 + $0x48] sm:$0xff] %v667
      %714 = vst [vmem:[#allocation10 + $0x50] sm:$0xff] %v672
      %715 = vst [vmem:[#allocation10 + $0x58] sm:$0xff] %v677
      %716 = vst [vmem:[#allocation10 + $0x60] sm:$0xff] %v682
      %717 = vst [vmem:[#allocation10 + $0x68] sm:$0xff] %v687
      %718 = vst [vmem:[#allocation10 + $0x70] sm:$0xff] %v692
      %719 = vst [vmem:[#allocation10 + $0x78] sm:$0xff] %v697
    $region37: #{tpu_custom_call.1} parent=1 // pred_fallthru
      _
    %p720 = scmp.gt.s32.totalorder 0, 0
    // Predicated region
    $region38: #{tpu_custom_call.1} parent=1 // pred_check
      %p721 = pneg %p720
    $region39: #{tpu_custom_call.1} parent=1 // pred_check_branch
      %723 = sbr.rel (%p721) target = $region41
    $region40: #{tpu_custom_call.1} parent=1 // pred_region
      %v724 = vld [vmem:[#allocation10] sm:$0xff]
      %v725 = vld [vmem:[#allocation10 + $0x8] sm:$0xff]
      %v726 = vld [vmem:[#allocation10 + $0x10] sm:$0xff]
      %v727 = vld [vmem:[#allocation10 + $0x18] sm:$0xff]
      %v728 = vld [vmem:[#allocation10 + $0x20] sm:$0xff]
      %v729 = vld [vmem:[#allocation10 + $0x28] sm:$0xff]
      %v730 = vld [vmem:[#allocation10 + $0x30] sm:$0xff]
      %v731 = vld [vmem:[#allocation10 + $0x38] sm:$0xff]
      %v732 = vld [vmem:[#allocation10 + $0x40] sm:$0xff]
      %v733 = vld [vmem:[#allocation10 + $0x48] sm:$0xff]
      %v734 = vld [vmem:[#allocation10 + $0x50] sm:$0xff]
      %v735 = vld [vmem:[#allocation10 + $0x58] sm:$0xff]
      %v736 = vld [vmem:[#allocation10 + $0x60] sm:$0xff]
      %v737 = vld [vmem:[#allocation10 + $0x68] sm:$0xff]
      %v738 = vld [vmem:[#allocation10 + $0x70] sm:$0xff]
      %v739 = vld [vmem:[#allocation10 + $0x78] sm:$0xff]
      %v740 = vadd.f32 %v724, %v622
      %v741 = vadd.f32 %v725, %v627
      %v742 = vadd.f32 %v726, %v632
      %v743 = vadd.f32 %v727, %v637
      %v744 = vadd.f32 %v728, %v642
      %v745 = vadd.f32 %v729, %v647
      %v746 = vadd.f32 %v730, %v652
      %v747 = vadd.f32 %v731, %v657
      %v748 = vadd.f32 %v732, %v662
      %v749 = vadd.f32 %v733, %v667
      %v750 = vadd.f32 %v734, %v672
      %v751 = vadd.f32 %v735, %v677
      %v752 = vadd.f32 %v736, %v682
      %v753 = vadd.f32 %v737, %v687
      %v754 = vadd.f32 %v738, %v692
      %v755 = vadd.f32 %v739, %v697
      %756 = vst [vmem:[#allocation10] sm:$0xff] %v740
      %757 = vst [vmem:[#allocation10 + $0x8] sm:$0xff] %v741
      %758 = vst [vmem:[#allocation10 + $0x10] sm:$0xff] %v742
      %759 = vst [vmem:[#allocation10 + $0x18] sm:$0xff] %v743
      %760 = vst [vmem:[#allocation10 + $0x20] sm:$0xff] %v744
      %761 = vst [vmem:[#allocation10 + $0x28] sm:$0xff] %v745
      %762 = vst [vmem:[#allocation10 + $0x30] sm:$0xff] %v746
      %763 = vst [vmem:[#allocation10 + $0x38] sm:$0xff] %v747
      %764 = vst [vmem:[#allocation10 + $0x40] sm:$0xff] %v748
      %765 = vst [vmem:[#allocation10 + $0x48] sm:$0xff] %v749
      %766 = vst [vmem:[#allocation10 + $0x50] sm:$0xff] %v750
      %767 = vst [vmem:[#allocation10 + $0x58] sm:$0xff] %v751
      %768 = vst [vmem:[#allocation10 + $0x60] sm:$0xff] %v752
      %769 = vst [vmem:[#allocation10 + $0x68] sm:$0xff] %v753
      %770 = vst [vmem:[#allocation10 + $0x70] sm:$0xff] %v754
      %771 = vst [vmem:[#allocation10 + $0x78] sm:$0xff] %v755
    $region41: #{tpu_custom_call.1} parent=1 // pred_fallthru
      _
    // Predicated region
    $region42: #{tpu_custom_call.1} parent=1 // pred_check
      _
    $region43: #{tpu_custom_call.1} parent=1 // pred_check_branch
      %773 = sbr.rel (0) target = $region45
    $region44: #{tpu_custom_call.1} parent=1 // pred_region
      %s775 = ssub.s32 2048, 2048
      %776 = vsyncadd [#allocation4], %s775
      %s777 = sshll.u32 [#allocation10], 4
      %s778 = int_to_ptr.vmem [resolvable:$true] %s777
      %783 = dma.vmem_to_hbm [thread:$0]  %s778, 2048, %s4, [#allocation4], 128, 128, 8
    $region45: #{tpu_custom_call.1} parent=1 // pred_fallthru
      _
    // Predicated region
    $region46: #{tpu_custom_call.1} parent=1 // pred_check
      _
    $region47: #{tpu_custom_call.1} parent=1 // pred_check_branch
      %785 = sbr.rel (0) target = $region49
    $region48: #{tpu_custom_call.1} parent=1 // pred_region
      %786 = dma.done [#allocation4], 2048
    $region49: #{tpu_custom_call.1} parent=1 // pred_fallthru
      _
    %787 = vsyncpa [#allocation3], 1
    %788 = vsyncpa [#allocation6], 1
    %789 = vsyncpa [#allocation9], 1
    %790 = vsyncpa [#allocation4], 1

</llo_original>
